<compile_context>
chip_gen: v6e
topology: v6e:2x2x1
jax: 0.10.0
libtpu: 0.0.40
codegen_flags: <defaults>
</compile_context>

<pallas_src>
import functools

import jax
import jax.numpy as jnp
from jax.experimental import pallas as pl
from jax.experimental.pallas import tpu as pltpu


def _round_up(v, m):
    return (v + m - 1) // m * m


def _graph_lstm_kernel(a_ref, x_ref, hmat_ref, h_ref, c_ref,
                       wx_ref, wh_ref, b_ref,
                       h_out_ref, c_out_ref,
                       inp_ref, z_ref,
                       *, tm, dh, dmax):
    """Fused graph-LSTM: grid = (layer, row_tile).

    a_ref:    [tm, N]        bf16 row tile of normalized adjacency
    x_ref:    [N, Dmax]      bf16 padded node features (layer-0 input)
    hmat_ref: [1, N, Dh]     bf16 h[l] (full, matmul operand)
    h_ref:    [1, tm, Dh]    f32 h[l] row tile (elementwise)
    c_ref:    [1, tm, Dh]    f32 c[l] row tile (elementwise)
    wx_ref:   [1, Dmax, 4Dh] bf16 gate-concat input weights (zero-padded rows)
    wh_ref:   [1, Dh, 4Dh]   bf16 gate-concat hidden weights
    b_ref:    [1, 1, 4Dh]    f32 combined bias (bx + bh)
    scratch:  inp_ref [N, Dmax] bf16 (current layer input),
              z_ref   [N, 4Dh]  bf16 (Z = inp@Wx + h@Wh + b)
    """
    layer = pl.program_id(0)
    i = pl.program_id(1)

    # Seed the resident layer-input scratch with x once (layer 0, first row tile).
    @pl.when(jnp.logical_and(layer == 0, i == 0))
    def _():
        inp_ref[...] = x_ref[...]

    # Once per layer: Z = inp @ Wx_cat + h[l] @ Wh_cat + (bx+bh), gates on the lane axis.
    @pl.when(i == 0)
    def _():
        z = jnp.dot(inp_ref[...], wx_ref[0], preferred_element_type=jnp.float32)
        z = z + jnp.dot(hmat_ref[0], wh_ref[0], preferred_element_type=jnp.float32)
        z = z + b_ref[0]
        z_ref[...] = z.astype(z_ref.dtype)

    # One wide aggregation matmul per row tile: G = A[i_tile] @ Z  -> [tm, 4*Dh].
    g = jnp.dot(a_ref[...], z_ref[...], preferred_element_type=jnp.float32)

    i_g = jax.nn.sigmoid(g[:, 0 * dh:1 * dh])
    f_g = jax.nn.sigmoid(g[:, 1 * dh:2 * dh])
    o_g = jax.nn.sigmoid(g[:, 2 * dh:3 * dh])
    c_t = jnp.tanh(g[:, 3 * dh:4 * dh])

    h_old = h_ref[0]
    c_old = c_ref[0]
    # Reference semantics: F gates the old *hidden* state; h_out uses the old cell.
    c_new = f_g * h_old + i_g * c_t
    h_new = o_g * jnp.tanh(c_old)

    c_out_ref[0] = c_new
    h_out_ref[0] = h_new

    # Stash h_new as the next layer's (bf16) matmul input.
    @pl.when(layer + 1 < pl.num_programs(0))
    def _():
        row0 = pl.multiple_of(i * tm, tm)
        h_bf = h_new.astype(inp_ref.dtype)
        if dh == dmax:
            inp_ref[pl.ds(row0, tm), :] = h_bf
        else:
            pad = jnp.zeros((tm, dmax - dh), inp_ref.dtype)
            inp_ref[pl.ds(row0, tm), :] = jnp.concatenate([h_bf, pad], axis=1)


def lstm_forward(params, a, x, h, c):
    """All graph-LSTM layers in one pallas_call. Returns (h_out, c_out) [L, N, Dh]."""
    n_layer, n, dh = h.shape
    in_dim = x.shape[1]
    dmax = max(in_dim, dh)
    ng = 4 * dh

    # Row tiling of the node axis (sublane-aligned).  For small graphs: one tile.
    tm = 256 if n >= 256 else _round_up(n, 8)
    n_pad = _round_up(n, tm)
    # TODO(synk): for very large / sparse graphs, tile the A contraction dim too and
    # drive a block-sparse index_map via PrefetchScalarGridSpec instead of dense A@Z.

    # Repack weights: gate-concatenated (i, f, o, c~) on the output axis, combined bias.
    wx_all, wh_all, b_all = [], [], []
    for (wx, wh, bx, bh) in params:
        wx_cat = jnp.concatenate([wx[g] for g in range(4)], axis=1)          # [din, 4dh]
        wh_cat = jnp.concatenate([wh[g] for g in range(4)], axis=1)          # [dh, 4dh]
        b_cat = jnp.concatenate([bx[g] + bh[g] for g in range(4)], axis=0)   # [4dh]
        din = wx_cat.shape[0]
        if din < dmax:
            wx_cat = jnp.pad(wx_cat, ((0, dmax - din), (0, 0)))
        wx_all.append(wx_cat)
        wh_all.append(wh_cat)
        b_all.append(b_cat)
    wx_all = jnp.stack(wx_all).astype(jnp.bfloat16)                 # [L, dmax, 4dh]
    wh_all = jnp.stack(wh_all).astype(jnp.bfloat16)                 # [L, dh, 4dh]
    b_all = jnp.stack(b_all).astype(jnp.float32)[:, None, :]        # [L, 1, 4dh]

    # Pad the node axis; bf16 copies for MXU operands, f32 for the elementwise update.
    a_p = jnp.pad(a, ((0, n_pad - n), (0, n_pad - n))).astype(jnp.bfloat16)
    x_p = jnp.pad(x, ((0, n_pad - n), (0, dmax - in_dim))).astype(jnp.bfloat16)
    h_p = jnp.pad(h, ((0, 0), (0, n_pad - n), (0, 0)))
    c_p = jnp.pad(c, ((0, 0), (0, n_pad - n), (0, 0))).astype(jnp.float32)
    h_mat = h_p.astype(jnp.bfloat16)
    h_elem = h_p.astype(jnp.float32)

    grid = (n_layer, n_pad // tm)
    kernel = functools.partial(_graph_lstm_kernel, tm=tm, dh=dh, dmax=dmax)

    # TODO(synk): the row-tile axis must stay "arbitrary" (not megacore-parallel) because
    # the inp/Z scratch carries state across row tiles and layers within this single call.
    h_out, c_out = pl.pallas_call(
        kernel,
        out_shape=(jax.ShapeDtypeStruct((n_layer, n_pad, dh), jnp.float32),
                   jax.ShapeDtypeStruct((n_layer, n_pad, dh), jnp.float32)),
        grid=grid,
        in_specs=[
            pl.BlockSpec((tm, n_pad), lambda l, i: (i, 0)),           # A row tile
            pl.BlockSpec((n_pad, dmax), lambda l, i: (0, 0)),         # x (full, padded)
            pl.BlockSpec((1, n_pad, dh), lambda l, i: (l, 0, 0)),     # h[l] full (bf16)
            pl.BlockSpec((1, tm, dh), lambda l, i: (l, i, 0)),        # h[l] row tile (f32)
            pl.BlockSpec((1, tm, dh), lambda l, i: (l, i, 0)),        # c[l] row tile (f32)
            pl.BlockSpec((1, dmax, ng), lambda l, i: (l, 0, 0)),      # Wx_cat[l]
            pl.BlockSpec((1, dh, ng), lambda l, i: (l, 0, 0)),        # Wh_cat[l]
            pl.BlockSpec((1, 1, ng), lambda l, i: (l, 0, 0)),         # b[l]
        ],
        out_specs=(
            pl.BlockSpec((1, tm, dh), lambda l, i: (l, i, 0)),
            pl.BlockSpec((1, tm, dh), lambda l, i: (l, i, 0)),
        ),
        scratch_shapes=[
            pltpu.VMEM((n_pad, dmax), jnp.bfloat16),   # resident current-layer input
            pltpu.VMEM((n_pad, ng), jnp.bfloat16),     # resident Z (gate pre-activations)
        ],
        compiler_params=pltpu.CompilerParams(
            dimension_semantics=("arbitrary", "arbitrary"),
            vmem_limit_bytes=48 * 1024 * 1024,         # fits v7x's 64 MiB VMEM budget
        ),
    )(a_p, x_p, h_mat, h_elem, c_p, wx_all, wh_all, b_all)

    return h_out[:, :n, :], c_out[:, :n, :]


# ------------------------- plain-JAX glue -------------------------

def normalized_adjacency(edge_idx, num_nodes, dtype=jnp.float32):
    """Dense D^-1/2 (A + I) D^-1/2 matching GCNConv's edge normalization."""
    row, col = edge_idx[0], edge_idx[1]
    loop = jnp.arange(num_nodes, dtype=edge_idx.dtype)
    row = jnp.concatenate([row, loop])
    col = jnp.concatenate([col, loop])
    w = jnp.ones((row.shape[0],), dtype)
    deg = jnp.zeros((num_nodes,), dtype).at[row].add(w)
    deg_inv = jnp.power(deg, -0.5)
    deg_inv = jnp.where(jnp.isinf(deg_inv), 0.0, deg_inv)
    norm = deg_inv[row] * w * deg_inv[col]
    a = jnp.zeros((num_nodes, num_nodes), dtype).at[row, col].add(norm)
    return a


def glorot_uniform(key, shape):
    fan_in, fan_out = shape[-2], shape[-1]
    lim = (6.0 / (fan_in + fan_out)) ** 0.5
    return jax.random.uniform(key, shape, jnp.float32, -lim, lim)


def init_lstm_params(key, in_dim, hidden_dim, n_layer):
    """Per layer: (wx[4,din,dh], wh[4,dh,dh], bx[4,dh], bh[4,dh]); gate order i,f,o,c~."""
    params = []
    for layer in range(n_layer):
        din = in_dim if layer == 0 else hidden_dim
        key, kx, kh = jax.random.split(key, 3)
        wx = glorot_uniform(kx, (4, din, hidden_dim))
        wh = glorot_uniform(kh, (4, hidden_dim, hidden_dim))
        bx = jnp.zeros((4, hidden_dim), jnp.float32)
        bh = jnp.zeros((4, hidden_dim), jnp.float32)
        params.append((wx, wh, bx, bh))
    return params


def lstm_forward_ref(params, a, x, h, c):
    """Pure-JAX f32 reference (module semantics) for the correctness check."""
    h_outs, c_outs = [], []
    inp = x
    for layer, (wx, wh, bx, bh) in enumerate(params):
        gates = []
        for g in range(4):
            gx = a @ (inp @ wx[g]) + bx[g]
            gh = a @ (h[layer] @ wh[g]) + bh[g]
            gates.append(gx + gh)
        i_g = jax.nn.sigmoid(gates[0])
        f_g = jax.nn.sigmoid(gates[1])
        o_g = jax.nn.sigmoid(gates[2])
        c_t = jnp.tanh(gates[3])
        c_l = f_g * h[layer] + i_g * c_t
        h_l = o_g * jnp.tanh(c[layer])
        h_outs.append(h_l)
        c_outs.append(c_l)
        inp = h_l
    return jnp.stack(h_outs), jnp.stack(c_outs)


if __name__ == "__main__":
    N, IN_DIM, HIDDEN, N_LAYER, E = 16, 8, 16, 2, 40

    key = jax.random.PRNGKey(0)
    k_edge, k_x, k_h, k_c, k_p = jax.random.split(key, 5)

    edge_idx = jax.random.randint(k_edge, (2, E), 0, N, dtype=jnp.int32)
    x = jax.random.normal(k_x, (N, IN_DIM), jnp.float32)
    h = jax.random.normal(k_h, (N_LAYER, N, HIDDEN), jnp.float32)
    c = jax.random.normal(k_c, (N_LAYER, N, HIDDEN), jnp.float32)

    a = normalized_adjacency(edge_idx, N)
    params = init_lstm_params(k_p, IN_DIM, HIDDEN, N_LAYER)

    h_out, c_out = lstm_forward(params, a, x, h, c)
    jax.block_until_ready((h_out, c_out))

    h_ref, c_ref = lstm_forward_ref(params, a, x, h, c)
    # bf16 MXU operands with f32 accumulation -> loosened tolerance vs the f32 reference.
    err_h = float(jnp.max(jnp.abs(h_out - h_ref)))
    err_c = float(jnp.max(jnp.abs(c_out - c_ref)))
    assert jnp.allclose(h_out, h_ref, atol=5e-2, rtol=5e-2), err_h
    assert jnp.allclose(c_out, c_ref, atol=5e-2, rtol=5e-2), err_c

    print("KERNEL_OK")
</pallas_src>

<mosaic_0001>
module attributes {stable_mosaic.version = 11 : i64} {
  func.func @_graph_lstm_kernel(%arg0: i32, %arg1: i32, %arg2: memref<16x16xbf16, #tpu.memory_space<vmem>>, %arg3: memref<16x16xbf16, #tpu.memory_space<vmem>>, %arg4: memref<1x16x16xbf16, #tpu.memory_space<vmem>>, %arg5: memref<1x16x16xf32, #tpu.memory_space<vmem>>, %arg6: memref<1x16x16xf32, #tpu.memory_space<vmem>>, %arg7: memref<1x16x64xbf16, #tpu.memory_space<vmem>>, %arg8: memref<1x16x64xbf16, #tpu.memory_space<vmem>>, %arg9: memref<1x1x64xf32, #tpu.memory_space<vmem>>, %arg10: memref<1x16x16xf32, #tpu.memory_space<vmem>>, %arg11: memref<1x16x16xf32, #tpu.memory_space<vmem>>, %arg12: memref<16x16xbf16, #tpu.memory_space<vmem>>, %arg13: memref<16x64xbf16, #tpu.memory_space<vmem>>) attributes {dimension_semantics = [#tpu.dimension_semantics<arbitrary>, #tpu.dimension_semantics<arbitrary>], iteration_bounds = array<i64: 2, 1>, scalar_prefetch = 0 : i64, scratch_operands = 2 : i64, tpu.core_type = #tpu.core_type<tc>, window_params = [{transform_indices = @transform_0, window_bounds = array<i64: 16, 16>}, {pipeline_mode = #tpu.pipeline_mode<synchronous>, transform_indices = @transform_1, window_bounds = array<i64: 16, 16>}, {transform_indices = @transform_2, window_bounds = array<i64: 1, 16, 16>}, {transform_indices = @transform_3, window_bounds = array<i64: 1, 16, 16>}, {transform_indices = @transform_4, window_bounds = array<i64: 1, 16, 16>}, {transform_indices = @transform_5, window_bounds = array<i64: 1, 16, 64>}, {transform_indices = @transform_6, window_bounds = array<i64: 1, 16, 64>}, {transform_indices = @transform_7, window_bounds = array<i64: 1, 1, 64>}, {transform_indices = @transform_8, window_bounds = array<i64: 1, 16, 16>}, {transform_indices = @transform_9, window_bounds = array<i64: 1, 16, 16>}]} {
    %c0_i32 = arith.constant 0 : i32
    %0 = arith.cmpi eq, %arg0, %c0_i32 : i32
    %c0_i32_0 = arith.constant 0 : i32
    %1 = arith.cmpi eq, %arg1, %c0_i32_0 : i32
    %2 = arith.andi %0, %1 : i1
    %3 = arith.extui %2 : i1 to i32
    %c0_i32_1 = arith.constant 0 : i32
    %4 = arith.cmpi ne, %3, %c0_i32_1 : i32
    scf.if %4 {
      %c0_23 = arith.constant 0 : index
      %c0_24 = arith.constant 0 : index
      %50 = vector.load %arg3[%c0_23, %c0_24] : memref<16x16xbf16, #tpu.memory_space<vmem>>, vector<16x16xbf16>
      %c0_25 = arith.constant 0 : index
      %c0_26 = arith.constant 0 : index
      %51 = vector.load %arg12[%c0_25, %c0_26] : memref<16x16xbf16, #tpu.memory_space<vmem>>, vector<16x16xbf16>
      tpu.vector_store %arg12[%c0_25, %c0_26], %50 {strides = array<i32>} : memref<16x16xbf16, #tpu.memory_space<vmem>>, vector<16x16xbf16>,
    } else {
    }
    %c0_i32_2 = arith.constant 0 : i32
    %5 = arith.cmpi eq, %arg1, %c0_i32_2 : i32
    %6 = arith.extui %5 : i1 to i32
    %c0_i32_3 = arith.constant 0 : i32
    %7 = arith.cmpi ne, %6, %c0_i32_3 : i32
    scf.if %7 {
      %c0_23 = arith.constant 0 : index
      %c0_24 = arith.constant 0 : index
      %50 = vector.load %arg12[%c0_23, %c0_24] : memref<16x16xbf16, #tpu.memory_space<vmem>>, vector<16x16xbf16>
      %c0_25 = arith.constant 0 : index
      %c0_26 = arith.constant 0 : index
      %c0_27 = arith.constant 0 : index
      %51 = vector.load %arg7[%c0_25, %c0_26, %c0_27] : memref<1x16x64xbf16, #tpu.memory_space<vmem>>, vector<1x16x64xbf16>
      %52 = vector.shape_cast %51 : vector<1x16x64xbf16> to vector<16x64xbf16>
      %cst_28 = arith.constant dense<0.000000e+00> : vector<16x64xf32>
      %53 = tpu.matmul %50, %52, %cst_28 {dimension_numbers = #tpu.dot_dimension_numbers<[1], [0], [0], [1], [0, 0, 1, 1], [], []>} : vector<16x16xbf16>, vector<16x64xbf16>, vector<16x64xf32> -> vector<16x64xf32>
      %c0_29 = arith.constant 0 : index
      %c0_30 = arith.constant 0 : index
      %c0_31 = arith.constant 0 : index
      %54 = vector.load %arg4[%c0_29, %c0_30, %c0_31] : memref<1x16x16xbf16, #tpu.memory_space<vmem>>, vector<1x16x16xbf16>
      %55 = vector.shape_cast %54 : vector<1x16x16xbf16> to vector<16x16xbf16>
      %c0_32 = arith.constant 0 : index
      %c0_33 = arith.constant 0 : index
      %c0_34 = arith.constant 0 : index
      %56 = vector.load %arg8[%c0_32, %c0_33, %c0_34] : memref<1x16x64xbf16, #tpu.memory_space<vmem>>, vector<1x16x64xbf16>
      %57 = vector.shape_cast %56 : vector<1x16x64xbf16> to vector<16x64xbf16>
      %cst_35 = arith.constant dense<0.000000e+00> : vector<16x64xf32>
      %58 = tpu.matmul %55, %57, %cst_35 {dimension_numbers = #tpu.dot_dimension_numbers<[1], [0], [0], [1], [0, 0, 1, 1], [], []>} : vector<16x16xbf16>, vector<16x64xbf16>, vector<16x64xf32> -> vector<16x64xf32>
      %59 = arith.addf %53, %58 : vector<16x64xf32>
      %c0_36 = arith.constant 0 : index
      %c0_37 = arith.constant 0 : index
      %c0_38 = arith.constant 0 : index
      %60 = vector.load %arg9[%c0_36, %c0_37, %c0_38] : memref<1x1x64xf32, #tpu.memory_space<vmem>>, vector<1x1x64xf32>
      %61 = vector.shape_cast %60 : vector<1x1x64xf32> to vector<1x64xf32>
      %62 = vector.broadcast %61 : vector<1x64xf32> to vector<16x64xf32>
      %63 = arith.addf %59, %62 : vector<16x64xf32>
      %64 = arith.truncf %63 : vector<16x64xf32> to vector<16x64xbf16>
      %c0_39 = arith.constant 0 : index
      %c0_40 = arith.constant 0 : index
      %65 = vector.load %arg13[%c0_39, %c0_40] : memref<16x64xbf16, #tpu.memory_space<vmem>>, vector<16x64xbf16>
      tpu.vector_store %arg13[%c0_39, %c0_40], %64 {strides = array<i32>} : memref<16x64xbf16, #tpu.memory_space<vmem>>, vector<16x64xbf16>,
    } else {
    }
    %c0 = arith.constant 0 : index
    %c0_4 = arith.constant 0 : index
    %8 = vector.load %arg2[%c0, %c0_4] : memref<16x16xbf16, #tpu.memory_space<vmem>>, vector<16x16xbf16>
    %c0_5 = arith.constant 0 : index
    %c0_6 = arith.constant 0 : index
    %9 = vector.load %arg13[%c0_5, %c0_6] : memref<16x64xbf16, #tpu.memory_space<vmem>>, vector<16x64xbf16>
    %cst = arith.constant dense<0.000000e+00> : vector<16x64xf32>
    %10 = tpu.matmul %8, %9, %cst {dimension_numbers = #tpu.dot_dimension_numbers<[1], [0], [0], [1], [0, 0, 1, 1], [], []>} : vector<16x16xbf16>, vector<16x64xbf16>, vector<16x64xf32> -> vector<16x64xf32>
    %11 = vector.extract_strided_slice %10 {offsets = [0, 0], sizes = [16, 16], strides = [1, 1]} : vector<16x64xf32> to vector<16x16xf32>
    %12 = arith.negf %11 : vector<16x16xf32>
    %13 = math.exp %12 : vector<16x16xf32>
    %cst_7 = arith.constant 1.000000e+00 : f32
    %14 = vector.broadcast %cst_7 : f32 to vector<16x16xf32>
    %15 = arith.addf %14, %13 : vector<16x16xf32>
    %16 = arith.divf %14, %15 : vector<16x16xf32>
    %17 = vector.extract_strided_slice %10 {offsets = [0, 16], sizes = [16, 16], strides = [1, 1]} : vector<16x64xf32> to vector<16x16xf32>
    %18 = arith.negf %17 : vector<16x16xf32>
    %19 = math.exp %18 : vector<16x16xf32>
    %cst_8 = arith.constant 1.000000e+00 : f32
    %20 = vector.broadcast %cst_8 : f32 to vector<16x16xf32>
    %21 = arith.addf %20, %19 : vector<16x16xf32>
    %22 = arith.divf %20, %21 : vector<16x16xf32>
    %23 = vector.extract_strided_slice %10 {offsets = [0, 32], sizes = [16, 16], strides = [1, 1]} : vector<16x64xf32> to vector<16x16xf32>
    %24 = arith.negf %23 : vector<16x16xf32>
    %25 = math.exp %24 : vector<16x16xf32>
    %cst_9 = arith.constant 1.000000e+00 : f32
    %26 = vector.broadcast %cst_9 : f32 to vector<16x16xf32>
    %27 = arith.addf %26, %25 : vector<16x16xf32>
    %28 = arith.divf %26, %27 : vector<16x16xf32>
    %29 = vector.extract_strided_slice %10 {offsets = [0, 48], sizes = [16, 16], strides = [1, 1]} : vector<16x64xf32> to vector<16x16xf32>
    %30 = math.tanh %29 : vector<16x16xf32>
    %c0_10 = arith.constant 0 : index
    %c0_11 = arith.constant 0 : index
    %c0_12 = arith.constant 0 : index
    %31 = vector.load %arg5[%c0_10, %c0_11, %c0_12] : memref<1x16x16xf32, #tpu.memory_space<vmem>>, vector<1x16x16xf32>
    %32 = vector.shape_cast %31 : vector<1x16x16xf32> to vector<16x16xf32>
    %c0_13 = arith.constant 0 : index
    %c0_14 = arith.constant 0 : index
    %c0_15 = arith.constant 0 : index
    %33 = vector.load %arg6[%c0_13, %c0_14, %c0_15] : memref<1x16x16xf32, #tpu.memory_space<vmem>>, vector<1x16x16xf32>
    %34 = vector.shape_cast %33 : vector<1x16x16xf32> to vector<16x16xf32>
    %35 = arith.mulf %22, %32 : vector<16x16xf32>
    %36 = arith.mulf %16, %30 : vector<16x16xf32>
    %37 = arith.addf %35, %36 : vector<16x16xf32>
    %38 = math.tanh %34 : vector<16x16xf32>
    %39 = arith.mulf %28, %38 : vector<16x16xf32>
    %c0_16 = arith.constant 0 : index
    %c0_17 = arith.constant 0 : index
    %c0_18 = arith.constant 0 : index
    %40 = vector.load %arg11[%c0_16, %c0_17, %c0_18] : memref<1x16x16xf32, #tpu.memory_space<vmem>>, vector<1x16x16xf32>
    %41 = vector.shape_cast %40 : vector<1x16x16xf32> to vector<16x16xf32>
    %42 = vector.shape_cast %37 : vector<16x16xf32> to vector<1x16x16xf32>
    tpu.vector_store %arg11[%c0_16, %c0_17, %c0_18], %42 {strides = array<i32>} : memref<1x16x16xf32, #tpu.memory_space<vmem>>, vector<1x16x16xf32>,
    %c0_19 = arith.constant 0 : index
    %c0_20 = arith.constant 0 : index
    %c0_21 = arith.constant 0 : index
    %43 = vector.load %arg10[%c0_19, %c0_20, %c0_21] : memref<1x16x16xf32, #tpu.memory_space<vmem>>, vector<1x16x16xf32>
    %44 = vector.shape_cast %43 : vector<1x16x16xf32> to vector<16x16xf32>
    %45 = vector.shape_cast %39 : vector<16x16xf32> to vector<1x16x16xf32>
    tpu.vector_store %arg10[%c0_19, %c0_20, %c0_21], %45 {strides = array<i32>} : memref<1x16x16xf32, #tpu.memory_space<vmem>>, vector<1x16x16xf32>,
    %c1_i32 = arith.constant 1 : i32
    %46 = arith.addi %arg0, %c1_i32 : i32
    %c2_i32 = arith.constant 2 : i32
    %47 = arith.cmpi slt, %46, %c2_i32 : i32
    %48 = arith.extui %47 : i1 to i32
    %c0_i32_22 = arith.constant 0 : i32
    %49 = arith.cmpi ne, %48, %c0_i32_22 : i32
    scf.if %49 {
      %c16_i32 = arith.constant 16 : i32
      %50 = arith.muli %arg1, %c16_i32 : i32
      %51 = tpu.assume_multiple %50, 16 : i32
      %52 = arith.truncf %39 : vector<16x16xf32> to vector<16x16xbf16>
      %53 = arith.index_cast %51 : i32 to index
      %c0_23 = arith.constant 0 : index
      %54 = vector.load %arg12[%53, %c0_23] : memref<16x16xbf16, #tpu.memory_space<vmem>>, vector<16x16xbf16>
      tpu.vector_store %arg12[%53, %c0_23], %52 {strides = array<i32>} : memref<16x16xbf16, #tpu.memory_space<vmem>>, vector<16x16xbf16>,
    } else {
    }
    return
  }
  func.func @transform_0(%arg0: i32, %arg1: i32) -> (i32, i32) {
    %c0_i32 = arith.constant 0 : i32
    %c0_i32_0 = arith.constant 0 : i32
    return %arg1, %c0_i32 : i32, i32
  }
  func.func @transform_1(%arg0: i32, %arg1: i32) -> (i32, i32) {
    %c0_i32 = arith.constant 0 : i32
    %c0_i32_0 = arith.constant 0 : i32
    %c0_i32_1 = arith.constant 0 : i32
    return %c0_i32, %c0_i32_0 : i32, i32
  }
  func.func @transform_2(%arg0: i32, %arg1: i32) -> (i32, i32, i32) {
    %c0_i32 = arith.constant 0 : i32
    %c0_i32_0 = arith.constant 0 : i32
    %c0_i32_1 = arith.constant 0 : i32
    return %arg0, %c0_i32, %c0_i32_0 : i32, i32, i32
  }
  func.func @transform_3(%arg0: i32, %arg1: i32) -> (i32, i32, i32) {
    %c0_i32 = arith.constant 0 : i32
    %c0_i32_0 = arith.constant 0 : i32
    return %arg0, %arg1, %c0_i32 : i32, i32, i32
  }
  func.func @transform_4(%arg0: i32, %arg1: i32) -> (i32, i32, i32) {
    %c0_i32 = arith.constant 0 : i32
    %c0_i32_0 = arith.constant 0 : i32
    return %arg0, %arg1, %c0_i32 : i32, i32, i32
  }
  func.func @transform_5(%arg0: i32, %arg1: i32) -> (i32, i32, i32) {
    %c0_i32 = arith.constant 0 : i32
    %c0_i32_0 = arith.constant 0 : i32
    %c0_i32_1 = arith.constant 0 : i32
    return %arg0, %c0_i32, %c0_i32_0 : i32, i32, i32
  }
  func.func @transform_6(%arg0: i32, %arg1: i32) -> (i32, i32, i32) {
    %c0_i32 = arith.constant 0 : i32
    %c0_i32_0 = arith.constant 0 : i32
    %c0_i32_1 = arith.constant 0 : i32
    return %arg0, %c0_i32, %c0_i32_0 : i32, i32, i32
  }
  func.func @transform_7(%arg0: i32, %arg1: i32) -> (i32, i32, i32) {
    %c0_i32 = arith.constant 0 : i32
    %c0_i32_0 = arith.constant 0 : i32
    %c0_i32_1 = arith.constant 0 : i32
    return %arg0, %c0_i32, %c0_i32_0 : i32, i32, i32
  }
  func.func @transform_8(%arg0: i32, %arg1: i32) -> (i32, i32, i32) {
    %c0_i32 = arith.constant 0 : i32
    %c0_i32_0 = arith.constant 0 : i32
    return %arg0, %arg1, %c0_i32 : i32, i32, i32
  }
  func.func @transform_9(%arg0: i32, %arg1: i32) -> (i32, i32, i32) {
    %c0_i32 = arith.constant 0 : i32
    %c0_i32_0 = arith.constant 0 : i32
    return %arg0, %arg1, %c0_i32 : i32, i32, i32
  }
}

</mosaic_0001>

<llo_original>
// kernel: tpu_custom_call.1
$region0: #{tpu_custom_call.1}
  #allocation0 [shape = 'u32[]', space=smem, size = 0x4, offset = 0x4, fixed_abs, tag = 'smem constant byte address 0x4 - core index']
  #allocation1 [shape = 'u32[144,128]{1,0:T(1,128)}', space=vmem, size = 0x12000, scoped, tag = 'internal scratch']
  #allocation2 [shape = 'bf16[16,16]{1,0:T(8,128)(2,1)}', space=vmem, size = 0x1000, scoped, tag = 'scratch operand']
  #allocation3 [shape = 'bf16[16,64]{1,0:T(8,128)(2,1)}', space=vmem, size = 0x1000, scoped, tag = 'scratch operand']
  %s0 = inlined_call_operand.hbm [shape: bf16[16,16], index: 0, kind: input, shape index: {}]
  %s1 = inlined_call_operand.hbm [shape: bf16[16,16], index: 1, kind: input, shape index: {}]
  %s2 = inlined_call_operand.hbm [shape: bf16[2,16,16], index: 2, kind: input, shape index: {}]
  %s3 = inlined_call_operand.hbm [shape: f32[2,16,16], index: 3, kind: input, shape index: {}]
  %s4 = inlined_call_operand.hbm [shape: f32[2,16,16], index: 4, kind: input, shape index: {}]
  %s5 = inlined_call_operand.hbm [shape: bf16[2,16,64], index: 5, kind: input, shape index: {}]
  %s6 = inlined_call_operand.hbm [shape: bf16[2,16,64], index: 6, kind: input, shape index: {}]
  %s7 = inlined_call_operand.vmem [shape: f32[2,1,64], index: 7, kind: input, shape index: {}]
  %s8 = inlined_call_operand.hbm [shape: f32[2,16,16], index: 8, kind: output, shape index: {0}]
  %s9 = inlined_call_operand.hbm [shape: f32[2,16,16], index: 9, kind: output, shape index: {1}]
  %10 = xla_tuple %s8, %s9
  %s11 = sld [smem:[#allocation0]]
  $region113: #{tpu_custom_call.1} parent=0
    _
  %s13 = ssub.s32 1, %s11
  %s14 = scalar_select 0, %s13, %s11
  $region1: #{tpu_custom_call.1} parent=0
    #allocation4 [shape = 'u8[4096]{0}', space=vmem, size = 0x1000, scoped, tag = 'input window, operand 0, single buffered']
    #allocation5 [shape = 's32[2]{0}', space=sflag, size = 0x8, scoped, tag = 'scoped memory for tpu_custom_call.1']
    #allocation6 [shape = 's32[2]{0}', space=sflag, size = 0x8, scoped, tag = 'scoped memory for tpu_custom_call.1']
    #allocation7 [shape = 'u8[4096]{0}', space=vmem, size = 0x1000, scoped, tag = 'input window, operand 1, single buffered']
    #allocation8 [shape = 's32[1]{0}', space=sflag, size = 0x4, scoped, tag = 'scoped memory for tpu_custom_call.1']
    #allocation9 [shape = 'u8[8192]{0}', space=vmem, size = 0x2000, scoped, tag = 'input window, operand 2']
    #allocation10 [shape = 'u8[16384]{0}', space=vmem, size = 0x4000, scoped, tag = 'input window, operand 3']
    #allocation11 [shape = 'u8[16384]{0}', space=vmem, size = 0x4000, scoped, tag = 'input window, operand 4']
    #allocation12 [shape = 'u8[8192]{0}', space=vmem, size = 0x2000, scoped, tag = 'input window, operand 5']
    #allocation13 [shape = 'u8[8192]{0}', space=vmem, size = 0x2000, scoped, tag = 'input window, operand 6']
    #allocation14 [shape = 'u8[16384]{0}', space=vmem, size = 0x4000, scoped, tag = 'output window, operand 0']
    #allocation15 [shape = 'u8[16384]{0}', space=vmem, size = 0x4000, scoped, tag = 'output window, operand 1']
    #allocation16 [shape = 's32[2]{0}', space=sflag, size = 0x8, scoped, tag = 'scoped memory for tpu_custom_call.1']
    %15 = vsyncpa [#allocation5], 0
    %16 = vsyncpa [#allocation8], 0
    %17 = vsyncpa [#allocation6], 0
    %s18 = scalar_lea.sflag [#allocation6], 1
    %19 = vsyncpa %s18, 0
    %20 = vsyncpa [#allocation16], 0
    %s21 = scalar_lea.sflag [#allocation16], 1
    %22 = vsyncpa %s21, 0
    loop: start=0, step=1, limit=4
    $region2: #{tpu_custom_call.1} parent=1 // loop_pre_header
      _
    $region3: #{tpu_custom_call.1} parent=1 // loop_header
      %s24 = sphi 0, %s28
      %p25 = scmp.ge.s32.totalorder %s24, 4
      %s31 = sphi 0, %s43
      %s32 = sphi 0, %s39
      %s33 = sphi 0, %s31
      %s34 = sphi 0, %s32
      %s35 = sphi 0, %s33
      %s36 = sphi 0, %s34
      %s46 = sphi 0, %s48
      %s49 = sphi 0, %s46
      %s50 = sphi 0, %s49
      %s66 = sphi 0, %s50
      %s70 = sphi 0, %s70
      %s72 = sphi 0, %s70
      %s73 = sphi 0, %s72
      %s87 = sphi 0, %s73
      %s93 = sphi 0, %s95
      %s96 = sphi 0, %s93
      %s97 = sphi 0, %s96
      %s113 = sphi 0, %s97
      %s121 = sphi 0, %s123
      %s124 = sphi 0, %s121
      %s125 = sphi 0, %s124
      %s141 = sphi 0, %s125
      %s149 = sphi 0, %s151
      %s152 = sphi 0, %s149
      %s153 = sphi 0, %s152
      %s169 = sphi 0, %s153
      %s175 = sphi 0, %s177
      %s178 = sphi 0, %s175
      %s179 = sphi 0, %s178
      %s195 = sphi 0, %s179
      %s201 = sphi 0, %s203
      %s204 = sphi 0, %s201
      %s205 = sphi 0, %s204
      %s221 = sphi 0, %s205
      %s227 = sphi 0, %s229
      %s230 = sphi 0, %s227
      %s231 = sphi 0, %s230
      %s247 = sphi 0, %s231
      %s255 = sphi 0, %s257
      %s258 = sphi 0, %s255
      %s259 = sphi 0, %s258
      %s275 = sphi 0, %s259
      %s283 = sphi 0, %s285
      %s286 = sphi 0, %s283
      %s287 = sphi 0, %s286
      %s303 = sphi 0, %s287
    $region4: #{tpu_custom_call.1} parent=1 // loop_header_branch
      %27 = sbr.rel (%p25) target = $region8
    $region5: #{tpu_custom_call.1} parent=1 // loop_body
      %s29 = ssub.s32 %s24, 1
      %s30 = ssub.s32 %s24, 2
      %s37 = sadd.s32 1, %s32
      %p38 = scmp.ge.s32.totalorder %s37, 1
      %s39 = scalar_select %p38, 0, %s37
      %s40 = sadd.s32 1, %s31
      %s41 = scalar_select %p38, %s40, %s31
      %p42 = scmp.ge.s32.totalorder %s41, 2
      %s43 = scalar_select %p42, 0, %s41
      %s44 = ssub.s32 %s32, %s39
      %p45 = scmp.eq.s32.totalorder %s44, 0
      %s47 = sadd.s32 %s46, 1
      %s48 = scalar_select %p45, %s46, %s47
      %p51 = pneg %p45
      %p52 = scmp.eq.s32.totalorder %s24, 1
      %p53 = por %p51, %p52
      %p54 = scmp.ne.s32.totalorder %s46, %s49
      %p55 = scmp.eq.s32.totalorder %s24, 0
      %p56 = por %p54, %p55
      %p57 = scmp.ne.s32.totalorder %s46, %s49
      %p58 = scmp.eq.s32.totalorder %s29, 1
      %p59 = por %p57, %p58
      %p60 = scmp.ne.s32.totalorder %s49, %s50
      %p61 = scmp.eq.s32.totalorder %s29, 0
      %p62 = por %p60, %p61
      %p63 = scmp.ne.s32.totalorder %s49, %s50
      %p64 = scmp.eq.s32.totalorder %s30, 1
      %p65 = por %p63, %p64
      %p67 = scmp.ne.s32.totalorder %s50, %s66
      %p68 = scmp.eq.s32.totalorder %s30, 0
      %p69 = por %p67, %p68
      %s71 = sadd.s32 %s70, 1
      %p74 = scmp.eq.s32.totalorder %s24, 1
      %p75 = scmp.ne.s32.totalorder %s70, %s72
      %p76 = scmp.eq.s32.totalorder %s24, 0
      %p77 = por %p75, %p76
      %p78 = scmp.ne.s32.totalorder %s70, %s72
      %p79 = scmp.eq.s32.totalorder %s29, 1
      %p80 = por %p78, %p79
      %p81 = scmp.ne.s32.totalorder %s72, %s73
      %p82 = scmp.eq.s32.totalorder %s29, 0
      %p83 = por %p81, %p82
      %p84 = scmp.ne.s32.totalorder %s72, %s73
      %p85 = scmp.eq.s32.totalorder %s30, 1
      %p86 = por %p84, %p85
      %p88 = scmp.ne.s32.totalorder %s73, %s87
      %p89 = scmp.eq.s32.totalorder %s30, 0
      %p90 = por %p88, %p89
      %s91 = ssub.s32 %s31, %s43
      %p92 = scmp.eq.s32.totalorder %s91, 0
      %s94 = sadd.s32 %s93, 1
      %s95 = scalar_select %p92, %s93, %s94
      %p98 = pneg %p92
      %p99 = scmp.eq.s32.totalorder %s24, 1
      %p100 = por %p98, %p99
      %p101 = scmp.ne.s32.totalorder %s93, %s96
      %p102 = scmp.eq.s32.totalorder %s24, 0
      %p103 = por %p101, %p102
      %p104 = scmp.ne.s32.totalorder %s93, %s96
      %p105 = scmp.eq.s32.totalorder %s29, 1
      %p106 = por %p104, %p105
      %p107 = scmp.ne.s32.totalorder %s96, %s97
      %p108 = scmp.eq.s32.totalorder %s29, 0
      %p109 = por %p107, %p108
      %p110 = scmp.ne.s32.totalorder %s96, %s97
      %p111 = scmp.eq.s32.totalorder %s30, 1
      %p112 = por %p110, %p111
      %p114 = scmp.ne.s32.totalorder %s97, %s113
      %p115 = scmp.eq.s32.totalorder %s30, 0
      %p116 = por %p114, %p115
      %s117 = ssub.s32 %s31, %s43
      %s118 = ssub.s32 %s32, %s39
      %s119 = sor.u32 %s117, %s118
      %p120 = scmp.eq.s32.totalorder %s119, 0
      %s122 = sadd.s32 %s121, 1
      %s123 = scalar_select %p120, %s121, %s122
      %p126 = pneg %p120
      %p127 = scmp.eq.s32.totalorder %s24, 1
      %p128 = por %p126, %p127
      %p129 = scmp.ne.s32.totalorder %s121, %s124
      %p130 = scmp.eq.s32.totalorder %s24, 0
      %p131 = por %p129, %p130
      %p132 = scmp.ne.s32.totalorder %s121, %s124
      %p133 = scmp.eq.s32.totalorder %s29, 1
      %p134 = por %p132, %p133
      %p135 = scmp.ne.s32.totalorder %s124, %s125
      %p136 = scmp.eq.s32.totalorder %s29, 0
      %p137 = por %p135, %p136
      %p138 = scmp.ne.s32.totalorder %s124, %s125
      %p139 = scmp.eq.s32.totalorder %s30, 1
      %p140 = por %p138, %p139
      %p142 = scmp.ne.s32.totalorder %s125, %s141
      %p143 = scmp.eq.s32.totalorder %s30, 0
      %p144 = por %p142, %p143
      %s145 = ssub.s32 %s31, %s43
      %s146 = ssub.s32 %s32, %s39
      %s147 = sor.u32 %s145, %s146
      %p148 = scmp.eq.s32.totalorder %s147, 0
      %s150 = sadd.s32 %s149, 1
      %s151 = scalar_select %p148, %s149, %s150
      %p154 = pneg %p148
      %p155 = scmp.eq.s32.totalorder %s24, 1
      %p156 = por %p154, %p155
      %p157 = scmp.ne.s32.totalorder %s149, %s152
      %p158 = scmp.eq.s32.totalorder %s24, 0
      %p159 = por %p157, %p158
      %p160 = scmp.ne.s32.totalorder %s149, %s152
      %p161 = scmp.eq.s32.totalorder %s29, 1
      %p162 = por %p160, %p161
      %p163 = scmp.ne.s32.totalorder %s152, %s153
      %p164 = scmp.eq.s32.totalorder %s29, 0
      %p165 = por %p163, %p164
      %p166 = scmp.ne.s32.totalorder %s152, %s153
      %p167 = scmp.eq.s32.totalorder %s30, 1
      %p168 = por %p166, %p167
      %p170 = scmp.ne.s32.totalorder %s153, %s169
      %p171 = scmp.eq.s32.totalorder %s30, 0
      %p172 = por %p170, %p171
      %s173 = ssub.s32 %s31, %s43
      %p174 = scmp.eq.s32.totalorder %s173, 0
      %s176 = sadd.s32 %s175, 1
      %s177 = scalar_select %p174, %s175, %s176
      %p180 = pneg %p174
      %p181 = scmp.eq.s32.totalorder %s24, 1
      %p182 = por %p180, %p181
      %p183 = scmp.ne.s32.totalorder %s175, %s178
      %p184 = scmp.eq.s32.totalorder %s24, 0
      %p185 = por %p183, %p184
      %p186 = scmp.ne.s32.totalorder %s175, %s178
      %p187 = scmp.eq.s32.totalorder %s29, 1
      %p188 = por %p186, %p187
      %p189 = scmp.ne.s32.totalorder %s178, %s179
      %p190 = scmp.eq.s32.totalorder %s29, 0
      %p191 = por %p189, %p190
      %p192 = scmp.ne.s32.totalorder %s178, %s179
      %p193 = scmp.eq.s32.totalorder %s30, 1
      %p194 = por %p192, %p193
      %p196 = scmp.ne.s32.totalorder %s179, %s195
      %p197 = scmp.eq.s32.totalorder %s30, 0
      %p198 = por %p196, %p197
      %s199 = ssub.s32 %s31, %s43
      %p200 = scmp.eq.s32.totalorder %s199, 0
      %s202 = sadd.s32 %s201, 1
      %s203 = scalar_select %p200, %s201, %s202
      %p206 = pneg %p200
      %p207 = scmp.eq.s32.totalorder %s24, 1
      %p208 = por %p206, %p207
      %p209 = scmp.ne.s32.totalorder %s201, %s204
      %p210 = scmp.eq.s32.totalorder %s24, 0
      %p211 = por %p209, %p210
      %p212 = scmp.ne.s32.totalorder %s201, %s204
      %p213 = scmp.eq.s32.totalorder %s29, 1
      %p214 = por %p212, %p213
      %p215 = scmp.ne.s32.totalorder %s204, %s205
      %p216 = scmp.eq.s32.totalorder %s29, 0
      %p217 = por %p215, %p216
      %p218 = scmp.ne.s32.totalorder %s204, %s205
      %p219 = scmp.eq.s32.totalorder %s30, 1
      %p220 = por %p218, %p219
      %p222 = scmp.ne.s32.totalorder %s205, %s221
      %p223 = scmp.eq.s32.totalorder %s30, 0
      %p224 = por %p222, %p223
      %s225 = ssub.s32 %s31, %s43
      %p226 = scmp.eq.s32.totalorder %s225, 0
      %s228 = sadd.s32 %s227, 1
      %s229 = scalar_select %p226, %s227, %s228
      %p232 = pneg %p226
      %p233 = scmp.eq.s32.totalorder %s24, 1
      %p234 = por %p232, %p233
      %p235 = scmp.ne.s32.totalorder %s227, %s230
      %p236 = scmp.eq.s32.totalorder %s24, 0
      %p237 = por %p235, %p236
      %p238 = scmp.ne.s32.totalorder %s227, %s230
      %p239 = scmp.eq.s32.totalorder %s29, 1
      %p240 = por %p238, %p239
      %p241 = scmp.ne.s32.totalorder %s230, %s231
      %p242 = scmp.eq.s32.totalorder %s29, 0
      %p243 = por %p241, %p242
      %p244 = scmp.ne.s32.totalorder %s230, %s231
      %p245 = scmp.eq.s32.totalorder %s30, 1
      %p246 = por %p244, %p245
      %p248 = scmp.ne.s32.totalorder %s231, %s247
      %p249 = scmp.eq.s32.totalorder %s30, 0
      %p250 = por %p248, %p249
      %s251 = ssub.s32 %s31, %s43
      %s252 = ssub.s32 %s32, %s39
      %s253 = sor.u32 %s251, %s252
      %p254 = scmp.eq.s32.totalorder %s253, 0
      %s256 = sadd.s32 %s255, 1
      %s257 = scalar_select %p254, %s255, %s256
      %p260 = pneg %p254
      %p261 = scmp.eq.s32.totalorder %s24, 1
      %p262 = por %p260, %p261
      %p263 = scmp.ne.s32.totalorder %s255, %s258
      %p264 = scmp.eq.s32.totalorder %s24, 0
      %p265 = por %p263, %p264
      %p266 = scmp.ne.s32.totalorder %s255, %s258
      %p267 = scmp.eq.s32.totalorder %s29, 1
      %p268 = por %p266, %p267
      %p269 = scmp.ne.s32.totalorder %s258, %s259
      %p270 = scmp.eq.s32.totalorder %s29, 0
      %p271 = por %p269, %p270
      %p272 = scmp.ne.s32.totalorder %s258, %s259
      %p273 = scmp.eq.s32.totalorder %s30, 1
      %p274 = por %p272, %p273
      %p276 = scmp.ne.s32.totalorder %s259, %s275
      %p277 = scmp.eq.s32.totalorder %s30, 0
      %p278 = por %p276, %p277
      %s279 = ssub.s32 %s31, %s43
      %s280 = ssub.s32 %s32, %s39
      %s281 = sor.u32 %s279, %s280
      %p282 = scmp.eq.s32.totalorder %s281, 0
      %s284 = sadd.s32 %s283, 1
      %s285 = scalar_select %p282, %s283, %s284
      %p288 = pneg %p282
      %p289 = scmp.eq.s32.totalorder %s24, 1
      %p290 = por %p288, %p289
      %p291 = scmp.ne.s32.totalorder %s283, %s286
      %p292 = scmp.eq.s32.totalorder %s24, 0
      %p293 = por %p291, %p292
      %p294 = scmp.ne.s32.totalorder %s283, %s286
      %p295 = scmp.eq.s32.totalorder %s29, 1
      %p296 = por %p294, %p295
      %p297 = scmp.ne.s32.totalorder %s286, %s287
      %p298 = scmp.eq.s32.totalorder %s29, 0
      %p299 = por %p297, %p298
      %p300 = scmp.ne.s32.totalorder %s286, %s287
      %p301 = scmp.eq.s32.totalorder %s30, 1
      %p302 = por %p300, %p301
      %p304 = scmp.ne.s32.totalorder %s287, %s303
      %p305 = scmp.eq.s32.totalorder %s30, 0
      %p306 = por %p304, %p305
      %p307 = scmp.le.s32.totalorder 1, %s24
      %p308 = scmp.lt.s32.totalorder %s24, 3
      %p309 = pnand %p307, %p308
      %p310 = pneg %p309
      // Predicated region
      $region9: #{tpu_custom_call.1} parent=5 // pred_check
        _
      $region10: #{tpu_custom_call.1} parent=5 // pred_check_branch
        %312 = sbr.rel (%p309) target = $region12
      $region11: #{tpu_custom_call.1} parent=5 // pred_region
        %s313 = ssub.s32 %s24, 1
        // Predicated region
        $region13: #{tpu_custom_call.1} parent=11 // pred_check
          %p314 = pneg %p62
        $region14: #{tpu_custom_call.1} parent=11 // pred_check_branch
          %316 = sbr.rel (%p314) target = $region16
        $region15: #{tpu_custom_call.1} parent=11 // pred_region
          %s317 = smul.u32 2, %s34
          %s319 = ssub.s32 128, 128
          %320 = vsyncadd [#allocation5], %s319
          %s321 = smul.addr %s317, 64
          %s322 = scalar_lea.hbm %s0, %s321
          %s323 = sshll.u32 [#allocation4], 4
          %s324 = int_to_ptr.vmem [resolvable:$true] %s323
          %329 = dma.hbm_to_vmem [thread:$0]  %s322, 128, %s324, [#allocation5], 64, 64, 4
        $region16: #{tpu_custom_call.1} parent=11 // pred_fallthru
          _
        // Predicated region
        $region17: #{tpu_custom_call.1} parent=11 // pred_check
          %p330 = pneg %p83
        $region18: #{tpu_custom_call.1} parent=11 // pred_check_branch
          %332 = sbr.rel (%p330) target = $region20
        $region19: #{tpu_custom_call.1} parent=11 // pred_region
          %s334 = ssub.s32 128, 128
          %335 = vsyncadd [#allocation8], %s334
          %s336 = sshll.u32 [#allocation7], 4
          %s337 = int_to_ptr.vmem [resolvable:$true] %s336
          %342 = dma.hbm_to_vmem [thread:$0]  %s1, 128, %s337, [#allocation8], 64, 64, 4
        $region20: #{tpu_custom_call.1} parent=11 // pred_fallthru
          _
      $region12: #{tpu_custom_call.1} parent=5 // pred_fallthru
        _
      %p343 = scmp.lt.s32.totalorder %s24, 2
      // Predicated region
      $region21: #{tpu_custom_call.1} parent=5 // pred_check
        %p344 = pneg %p343
      $region22: #{tpu_custom_call.1} parent=5 // pred_check_branch
        %346 = sbr.rel (%p344) target = $region24
      $region23: #{tpu_custom_call.1} parent=5 // pred_region
        // Predicated region
        $region25: #{tpu_custom_call.1} parent=23 // pred_check
          %p347 = pneg %p103
        $region26: #{tpu_custom_call.1} parent=23 // pred_check_branch
          %349 = sbr.rel (%p347) target = $region28
        $region27: #{tpu_custom_call.1} parent=23 // pred_region
          %s350 = sand.u32 %s24, 1
          %s351 = scalar_lea.sflag [#allocation5], %s350
          %s352 = sand.u32 %s93, 1
          %s353 = smul.addr %s352, 8
          %s354 = scalar_lea.vmem [#allocation9], %s353
          %s356 = ssub.s32 128, 128
          %357 = vsyncadd %s351, %s356
          %s358 = smul.addr %s31, 2
          %s359 = smul.addr %s358, 64
          %s360 = scalar_lea.hbm %s2, %s359
          %s361 = sshll.u32 %s354, 4
          %s362 = int_to_ptr.vmem [resolvable:$true] %s361
          %367 = dma.hbm_to_vmem [thread:$0]  %s360, 128, %s362, %s351, 64, 64, 4
        $region28: #{tpu_custom_call.1} parent=23 // pred_fallthru
          _
        // Predicated region
        $region29: #{tpu_custom_call.1} parent=23 // pred_check
          %p368 = pneg %p131
        $region30: #{tpu_custom_call.1} parent=23 // pred_check_branch
          %370 = sbr.rel (%p368) target = $region32
        $region31: #{tpu_custom_call.1} parent=23 // pred_region
          %s371 = sand.u32 %s24, 1
          %s372 = scalar_lea.sflag [#allocation5], %s371
          %s373 = sand.u32 %s121, 1
          %s374 = smul.addr %s373, 16
          %s375 = scalar_lea.vmem [#allocation10], %s374
          %s376 = smul.u32 2, %s32
          %s378 = ssub.s32 256, 256
          %379 = vsyncadd %s372, %s378
          %s380 = smul.addr %s31, 2
          %s381 = sadd.s32 %s376, %s380
          %s382 = smul.addr %s381, 128
          %s383 = scalar_lea.hbm %s3, %s382
          %s384 = sshll.u32 %s375, 4
          %s385 = int_to_ptr.vmem [resolvable:$true] %s384
          %390 = dma.hbm_to_vmem [thread:$0]  %s383, 256, %s385, %s372, 128, 128, 8
        $region32: #{tpu_custom_call.1} parent=23 // pred_fallthru
          _
        // Predicated region
        $region33: #{tpu_custom_call.1} parent=23 // pred_check
          %p391 = pneg %p159
        $region34: #{tpu_custom_call.1} parent=23 // pred_check_branch
          %393 = sbr.rel (%p391) target = $region36
        $region35: #{tpu_custom_call.1} parent=23 // pred_region
          %s394 = sand.u32 %s24, 1
          %s395 = scalar_lea.sflag [#allocation5], %s394
          %s396 = sand.u32 %s149, 1
          %s397 = smul.addr %s396, 16
          %s398 = scalar_lea.vmem [#allocation11], %s397
          %s399 = smul.u32 2, %s32
          %s401 = ssub.s32 256, 256
          %402 = vsyncadd %s395, %s401
          %s403 = smul.addr %s31, 2
          %s404 = sadd.s32 %s399, %s403
          %s405 = smul.addr %s404, 128
          %s406 = scalar_lea.hbm %s4, %s405
          %s407 = sshll.u32 %s398, 4
          %s408 = int_to_ptr.vmem [resolvable:$true] %s407
          %413 = dma.hbm_to_vmem [thread:$0]  %s406, 256, %s408, %s395, 128, 128, 8
        $region36: #{tpu_custom_call.1} parent=23 // pred_fallthru
          _
        // Predicated region
        $region37: #{tpu_custom_call.1} parent=23 // pred_check
          %p414 = pneg %p185
        $region38: #{tpu_custom_call.1} parent=23 // pred_check_branch
          %416 = sbr.rel (%p414) target = $region40
        $region39: #{tpu_custom_call.1} parent=23 // pred_region
          %s417 = sand.u32 %s24, 1
          %s418 = scalar_lea.sflag [#allocation5], %s417
          %s419 = sand.u32 %s175, 1
          %s420 = smul.addr %s419, 8
          %s421 = scalar_lea.vmem [#allocation12], %s420
          %s423 = ssub.s32 128, 128
          %424 = vsyncadd %s418, %s423
          %s425 = smul.addr %s31, 2
          %s426 = smul.addr %s425, 64
          %s427 = scalar_lea.hbm %s5, %s426
          %s428 = sshll.u32 %s421, 4
          %s429 = int_to_ptr.vmem [resolvable:$true] %s428
          %434 = dma.hbm_to_vmem [thread:$0]  %s427, 128, %s429, %s418, 64, 64, 4
        $region40: #{tpu_custom_call.1} parent=23 // pred_fallthru
          _
        // Predicated region
        $region41: #{tpu_custom_call.1} parent=23 // pred_check
          %p435 = pneg %p211
        $region42: #{tpu_custom_call.1} parent=23 // pred_check_branch
          %437 = sbr.rel (%p435) target = $region44
        $region43: #{tpu_custom_call.1} parent=23 // pred_region
          %s438 = sand.u32 %s24, 1
          %s439 = scalar_lea.sflag [#allocation5], %s438
          %s440 = sand.u32 %s201, 1
          %s441 = smul.addr %s440, 8
          %s442 = scalar_lea.vmem [#allocation13], %s441
          %s444 = ssub.s32 128, 128
          %445 = vsyncadd %s439, %s444
          %s446 = smul.addr %s31, 2
          %s447 = smul.addr %s446, 64
          %s448 = scalar_lea.hbm %s6, %s447
          %s449 = sshll.u32 %s442, 4
          %s450 = int_to_ptr.vmem [resolvable:$true] %s449
          %455 = dma.hbm_to_vmem [thread:$0]  %s448, 128, %s450, %s439, 64, 64, 4
        $region44: #{tpu_custom_call.1} parent=23 // pred_fallthru
          _
        // Predicated region
        $region45: #{tpu_custom_call.1} parent=23 // pred_check
          %p456 = pneg %p237
        $region46: #{tpu_custom_call.1} parent=23 // pred_check_branch
          %458 = sbr.rel (%p456) target = $region48
        $region47: #{tpu_custom_call.1} parent=23 // pred_region
          %p459 = scmp.lt.s32.totalorder %s31, 1
          %s460 = scalar_select %p459, %s31, 1
          %s461 = scalar_lea.vmem %s7, %s460
        $region48: #{tpu_custom_call.1} parent=23 // pred_fallthru
          _
      $region24: #{tpu_custom_call.1} parent=5 // pred_fallthru
        _
      %p462 = scmp.le.s32.totalorder 1, %s24
      %p463 = scmp.lt.s32.totalorder %s24, 3
      %p464 = pnand %p462, %p463
      %p465 = pneg %p464
      // Predicated region
      $region49: #{tpu_custom_call.1} parent=5 // pred_check
        _
      $region50: #{tpu_custom_call.1} parent=5 // pred_check_branch
        %467 = sbr.rel (%p464) target = $region52
      $region51: #{tpu_custom_call.1} parent=5 // pred_region
        %s468 = ssub.s32 %s24, 1
        // Predicated region
        $region53: #{tpu_custom_call.1} parent=51 // pred_check
          %p469 = pneg %p62
        $region54: #{tpu_custom_call.1} parent=51 // pred_check_branch
          %471 = sbr.rel (%p469) target = $region56
        $region55: #{tpu_custom_call.1} parent=51 // pred_region
          %472 = dma.done [#allocation5], 128
        $region56: #{tpu_custom_call.1} parent=51 // pred_fallthru
          _
        // Predicated region
        $region57: #{tpu_custom_call.1} parent=51 // pred_check
          %p473 = pneg %p83
        $region58: #{tpu_custom_call.1} parent=51 // pred_check_branch
          %475 = sbr.rel (%p473) target = $region60
        $region59: #{tpu_custom_call.1} parent=51 // pred_region
          %476 = dma.done [#allocation8], 128
        $region60: #{tpu_custom_call.1} parent=51 // pred_fallthru
          _
        %s477 = sand.u32 %s29, 1
        %s478 = scalar_lea.sflag [#allocation5], %s477
        %s479 = sand.u32 %s96, 1
        %s480 = smul.addr %s479, 8
        %s481 = scalar_lea.vmem [#allocation9], %s480
        // Predicated region
        $region61: #{tpu_custom_call.1} parent=51 // pred_check
          %p482 = pneg %p109
        $region62: #{tpu_custom_call.1} parent=51 // pred_check_branch
          %484 = sbr.rel (%p482) target = $region64
        $region63: #{tpu_custom_call.1} parent=51 // pred_region
          %485 = dma.done %s478, 128
        $region64: #{tpu_custom_call.1} parent=51 // pred_fallthru
          _
        %s486 = sand.u32 %s29, 1
        %s487 = scalar_lea.sflag [#allocation5], %s486
        %s488 = sand.u32 %s124, 1
        %s489 = smul.addr %s488, 16
        %s490 = scalar_lea.vmem [#allocation10], %s489
        // Predicated region
        $region65: #{tpu_custom_call.1} parent=51 // pred_check
          %p491 = pneg %p137
        $region66: #{tpu_custom_call.1} parent=51 // pred_check_branch
          %493 = sbr.rel (%p491) target = $region68
        $region67: #{tpu_custom_call.1} parent=51 // pred_region
          %494 = dma.done %s487, 256
        $region68: #{tpu_custom_call.1} parent=51 // pred_fallthru
          _
        %s495 = sand.u32 %s29, 1
        %s496 = scalar_lea.sflag [#allocation5], %s495
        %s497 = sand.u32 %s152, 1
        %s498 = smul.addr %s497, 16
        %s499 = scalar_lea.vmem [#allocation11], %s498
        // Predicated region
        $region69: #{tpu_custom_call.1} parent=51 // pred_check
          %p500 = pneg %p165
        $region70: #{tpu_custom_call.1} parent=51 // pred_check_branch
          %502 = sbr.rel (%p500) target = $region72
        $region71: #{tpu_custom_call.1} parent=51 // pred_region
          %503 = dma.done %s496, 256
        $region72: #{tpu_custom_call.1} parent=51 // pred_fallthru
          _
        %s504 = sand.u32 %s29, 1
        %s505 = scalar_lea.sflag [#allocation5], %s504
        %s506 = sand.u32 %s178, 1
        %s507 = smul.addr %s506, 8
        %s508 = scalar_lea.vmem [#allocation12], %s507
        // Predicated region
        $region73: #{tpu_custom_call.1} parent=51 // pred_check
          %p509 = pneg %p191
        $region74: #{tpu_custom_call.1} parent=51 // pred_check_branch
          %511 = sbr.rel (%p509) target = $region76
        $region75: #{tpu_custom_call.1} parent=51 // pred_region
          %512 = dma.done %s505, 128
        $region76: #{tpu_custom_call.1} parent=51 // pred_fallthru
          _
        %s513 = sand.u32 %s29, 1
        %s514 = scalar_lea.sflag [#allocation5], %s513
        %s515 = sand.u32 %s204, 1
        %s516 = smul.addr %s515, 8
        %s517 = scalar_lea.vmem [#allocation13], %s516
        // Predicated region
        $region77: #{tpu_custom_call.1} parent=51 // pred_check
          %p518 = pneg %p217
        $region78: #{tpu_custom_call.1} parent=51 // pred_check_branch
          %520 = sbr.rel (%p518) target = $region80
        $region79: #{tpu_custom_call.1} parent=51 // pred_region
          %521 = dma.done %s514, 128
        $region80: #{tpu_custom_call.1} parent=51 // pred_fallthru
          _
        %p522 = pneg %p62
        %p523 = pneg %p59
        %p524 = pneg %p83
        %p525 = pneg %p80
        %s526 = sand.u32 %s29, 1
        %s527 = scalar_lea.sflag [#allocation5], %s526
        %s528 = sand.u32 %s96, 1
        %s529 = smul.addr %s528, 8
        %s530 = scalar_lea.vmem [#allocation9], %s529
        %p531 = pneg %p109
        %p532 = pneg %p106
        %s533 = sand.u32 %s29, 1
        %s534 = scalar_lea.sflag [#allocation5], %s533
        %s535 = sand.u32 %s124, 1
        %s536 = smul.addr %s535, 16
        %s537 = scalar_lea.vmem [#allocation10], %s536
        %p538 = pneg %p137
        %p539 = pneg %p134
        %s540 = sand.u32 %s29, 1
        %s541 = scalar_lea.sflag [#allocation5], %s540
        %s542 = sand.u32 %s152, 1
        %s543 = smul.addr %s542, 16
        %s544 = scalar_lea.vmem [#allocation11], %s543
        %p545 = pneg %p165
        %p546 = pneg %p162
        %s547 = sand.u32 %s29, 1
        %s548 = scalar_lea.sflag [#allocation5], %s547
        %s549 = sand.u32 %s178, 1
        %s550 = smul.addr %s549, 8
        %s551 = scalar_lea.vmem [#allocation12], %s550
        %p552 = pneg %p191
        %p553 = pneg %p188
        %s554 = sand.u32 %s29, 1
        %s555 = scalar_lea.sflag [#allocation5], %s554
        %s556 = sand.u32 %s204, 1
        %s557 = smul.addr %s556, 8
        %s558 = scalar_lea.vmem [#allocation13], %s557
        %p559 = pneg %p217
        %p560 = pneg %p214
        %p561 = scmp.lt.s32.totalorder %s33, 1
        %s562 = scalar_select %p561, %s33, 1
        %s563 = scalar_lea.vmem %s7, %s562
        %p564 = pneg %p243
        %p565 = pneg %p240
        %p566 = pneg %p271
        %p567 = pneg %p268
        %s568 = sand.u32 %s258, 1
        %s569 = scalar_lea.sflag [#allocation6], %s568
        %s570 = sand.u32 %s258, 1
        %s571 = smul.addr %s570, 16
        %s572 = scalar_lea.vmem [#allocation14], %s571
        %p573 = pneg %p299
        %p574 = pneg %p296
        %s575 = sand.u32 %s286, 1
        %s576 = scalar_lea.sflag [#allocation16], %s575
        %s577 = sand.u32 %s286, 1
        %s578 = smul.addr %s577, 16
        %s579 = scalar_lea.vmem [#allocation15], %s578
        %s580 = smul.u32 2, %s34
        %s581 = smul.u32 2, %s34
        %s582 = smul.u32 2, %s34
        %p583 = scmp.lt.s32.totalorder %s33, 1
        %s584 = scalar_select %p583, %s33, 1
        %s585 = scalar_lea.vmem %s7, %s584
        %s586 = smul.u32 2, %s34
        %s587 = smul.u32 2, %s34
        %p589 = scmp.eq.s32.totalorder %s33, 0
        %p590 = scmp.eq.s32.totalorder %s34, 0
        %p591 = pnand %p589, %p590
        %p592 = pneg %p591
        // Predicated region
        $region81: #{tpu_custom_call.1} parent=51 // pred_check
          _
        $region82: #{tpu_custom_call.1} parent=51 // pred_check_branch
          %594 = sbr.rel (%p591) target = $region84
        $region83: #{tpu_custom_call.1} parent=51 // pred_region
          %v595 = vld [vmem:[#allocation7] sm:$0xf]
          %v596 = vld [vmem:[#allocation7 + $0x4] sm:$0xf]
          %vm597 = vcmask 125952
          %598 = vst.msk [vmem:[#allocation2] sm:$0xf] %vm597, %v595
          %599 = vst.msk [vmem:[#allocation2 + $0x4] sm:$0xf] %vm597, %v596
        $region84: #{tpu_custom_call.1} parent=51 // pred_fallthru
          _
        // Predicated region
        $region85: #{tpu_custom_call.1} parent=51 // pred_check
          %p600 = pneg %p590
        $region86: #{tpu_custom_call.1} parent=51 // pred_check_branch
          %602 = sbr.rel (%p600) target = $region88
        $region87: #{tpu_custom_call.1} parent=51 // pred_region
          %v603 = vld [vmem:[#allocation2] sm:$0xf]
          %v604 = vld [vmem:[#allocation2 + $0x4] sm:$0xf]
          %v605 = vld [vmem:[%s508] sm:$0xf]
          %v606 = vld [vmem:[%s508 + $0x4] sm:$0xf]
          %v607 = vld [vmem:[%s481] sm:$0xf]
          %v608 = vld [vmem:[%s481 + $0x4] sm:$0xf]
          %v609 = vld [vmem:[%s517] sm:$0xf]
          %v610 = vld [vmem:[%s517 + $0x4] sm:$0xf]
          %v613 = vunpack.c.l.b16 %v607
          %v614 = vunpack.c.l.b16 %v608
          %v615 = vpack.c.b16 %v614, %v613
          %v618 = vunpack.c.l.b16 %v609
          %v619 = vunpack.c.l.b16 %v610
          %v620 = vpack.c.b16 %v619, %v618
          %vm622 = vcmask 130048
          %v624 = vsel %vm622, %v615, 0
          %626 = vmatprep.subr.bf16.mxu0 0
          %627 = vmatpush1.bf16.msra.mxu0 0
          %628 = vmatprep.subr.bf16.mxu0 0
          %629 = vmatpush1.bf16.msra.mxu0 0
          %630 = vmatprep.subr.bf16.mxu0 0
          %631 = vmatpush1.bf16.msra.mxu0 0
          %632 = vmatprep.subr.bf16.mxu0 0
          %633 = vmatpush1.bf16.msra.mxu0 0
          %634 = vmatprep.subr.bf16.mxu0 0
          %635 = vmatpush1.bf16.msra.mxu0 0
          %636 = vmatprep.subr.bf16.mxu0 0
          %637 = vmatpush1.bf16.msra.mxu0 0
          %638 = vmatprep.subr.bf16.mxu0 0
          %639 = vmatpush1.bf16.msra.mxu0 0
          %640 = vmatprep.subr.bf16.mxu0 0
          %641 = vmatpush1.bf16.msra.mxu0 %v620
          %642 = vmatprep.subr.bf16.mxu0 0
          %643 = vmatpush2.bf16.msra.mxu0 0
          %644 = vmatprep.subr.bf16.mxu0 0
          %645 = vmatpush2.bf16.msra.mxu0 0
          %646 = vmatprep.subr.bf16.mxu0 0
          %647 = vmatpush2.bf16.msra.mxu0 0
          %648 = vmatprep.subr.bf16.mxu0 0
          %649 = vmatpush2.bf16.msra.mxu0 0
          %650 = vmatprep.subr.bf16.mxu0 0
          %651 = vmatpush2.bf16.msra.mxu0 0
          %652 = vmatprep.subr.bf16.mxu0 0
          %653 = vmatpush2.bf16.msra.mxu0 0
          %654 = vmatprep.subr.bf16.mxu0 0
          %655 = vmatpush2.bf16.msra.mxu0 0
          %656 = vmatprep.subr.bf16.mxu0 0
          %657 = vmatpush2.bf16.msra.mxu0 0
          %658 = vmatprep.mubr.bf16.mxu0 0
          %659 = vmatmul.mubr.bf16.gmra.mxu0 %v624
          %v660 = vpop.f32.mrf.mxu0
          %v661 = vadd.f32 0.0, %v660
          %v662 = vpop.f32.mrf.mxu0
          %v663 = vpop.f32.mrf.mxu0
          %v664 = vadd.f32 0.0, %v663
          %v665 = vpop.f32.mrf.mxu0
          %666 = vdwg.mxu0
          %v669 = vunpack.c.l.b16 %v603
          %v670 = vunpack.c.l.b16 %v604
          %v671 = vpack.c.b16 %v670, %v669
          %v674 = vunpack.c.l.b16 %v605
          %v675 = vunpack.c.l.b16 %v606
          %v676 = vpack.c.b16 %v675, %v674
          %v679 = vsel %vm622, %v671, 0
          %681 = vmatprep.subr.bf16.mxu0 0
          %682 = vmatpush1.bf16.msra.mxu0 0
          %683 = vmatprep.subr.bf16.mxu0 0
          %684 = vmatpush1.bf16.msra.mxu0 0
          %685 = vmatprep.subr.bf16.mxu0 0
          %686 = vmatpush1.bf16.msra.mxu0 0
          %687 = vmatprep.subr.bf16.mxu0 0
          %688 = vmatpush1.bf16.msra.mxu0 0
          %689 = vmatprep.subr.bf16.mxu0 0
          %690 = vmatpush1.bf16.msra.mxu0 0
          %691 = vmatprep.subr.bf16.mxu0 0
          %692 = vmatpush1.bf16.msra.mxu0 0
          %693 = vmatprep.subr.bf16.mxu0 0
          %694 = vmatpush1.bf16.msra.mxu0 0
          %695 = vmatprep.subr.bf16.mxu0 0
          %696 = vmatpush1.bf16.msra.mxu0 %v676
          %697 = vmatprep.subr.bf16.mxu0 0
          %698 = vmatpush2.bf16.msra.mxu0 0
          %699 = vmatprep.subr.bf16.mxu0 0
          %700 = vmatpush2.bf16.msra.mxu0 0
          %701 = vmatprep.subr.bf16.mxu0 0
          %702 = vmatpush2.bf16.msra.mxu0 0
          %703 = vmatprep.subr.bf16.mxu0 0
          %704 = vmatpush2.bf16.msra.mxu0 0
          %705 = vmatprep.subr.bf16.mxu0 0
          %706 = vmatpush2.bf16.msra.mxu0 0
          %707 = vmatprep.subr.bf16.mxu0 0
          %708 = vmatpush2.bf16.msra.mxu0 0
          %709 = vmatprep.subr.bf16.mxu0 0
          %710 = vmatpush2.bf16.msra.mxu0 0
          %711 = vmatprep.subr.bf16.mxu0 0
          %712 = vmatpush2.bf16.msra.mxu0 0
          %713 = vmatprep.mubr.bf16.mxu0 0
          %714 = vmatmul.mubr.bf16.gmra.mxu0 %v679
          %v715 = vpop.f32.mrf.mxu0
          %v716 = vadd.f32 %v661, %v715
          %v717 = vpop.f32.mrf.mxu0
          %v718 = vpop.f32.mrf.mxu0
          %v719 = vadd.f32 %v664, %v718
          %v720 = vpop.f32.mrf.mxu0
          %721 = vdwg.mxu0
          %v722 = vld [vmem:[%s585] sm:$0x1]
          %v724 = vlaneseq
          %v725 = vshrl.u32 %v724, 7
          %v726 = vsub.s32 0, %v725
          %v727 = vrot.slane %v722, %v726
          %v729 = vadd.f32 %v716, %v727
          %v730 = vadd.f32 %v719, %v727
          %v731 = vpack.c.bf16 %v730, %v729
          %v733 = vunpack.c.l.b16 %v731
          %v734 = vunpack.c.h.b16 %v731
          %v735 = vpack.c.b16 %v733, %v733
          %v736 = vpack.c.b16 %v734, %v734
          %vm739 = vcmask 519168
          %740 = vst.msk [vmem:[#allocation3] sm:$0xf] %vm739, %v735
          %741 = vst.msk [vmem:[#allocation3 + $0x4] sm:$0xf] %vm739, %v736
        $region88: #{tpu_custom_call.1} parent=51 // pred_fallthru
          _
        %v742 = vld [vmem:[#allocation4] sm:$0xf]
        %v743 = vld [vmem:[#allocation4 + $0x4] sm:$0xf]
        %v744 = vld [vmem:[#allocation3] sm:$0xf]
        %v745 = vld [vmem:[#allocation3 + $0x4] sm:$0xf]
        %v748 = vunpack.c.l.b16 %v742
        %v749 = vunpack.c.l.b16 %v743
        %v750 = vpack.c.b16 %v749, %v748
        %v753 = vunpack.c.l.b16 %v744
        %v754 = vunpack.c.l.b16 %v745
        %v755 = vpack.c.b16 %v754, %v753
        %vm757 = vcmask 130048
        %v759 = vsel %vm757, %v750, 0
        %761 = vmatprep.subr.bf16.mxu0 0
        %762 = vmatpush1.bf16.msra.mxu0 0
        %763 = vmatprep.subr.bf16.mxu0 0
        %764 = vmatpush1.bf16.msra.mxu0 0
        %765 = vmatprep.subr.bf16.mxu0 0
        %766 = vmatpush1.bf16.msra.mxu0 0
        %767 = vmatprep.subr.bf16.mxu0 0
        %768 = vmatpush1.bf16.msra.mxu0 0
        %769 = vmatprep.subr.bf16.mxu0 0
        %770 = vmatpush1.bf16.msra.mxu0 0
        %771 = vmatprep.subr.bf16.mxu0 0
        %772 = vmatpush1.bf16.msra.mxu0 0
        %773 = vmatprep.subr.bf16.mxu0 0
        %774 = vmatpush1.bf16.msra.mxu0 0
        %775 = vmatprep.subr.bf16.mxu0 0
        %776 = vmatpush1.bf16.msra.mxu0 %v755
        %777 = vmatprep.subr.bf16.mxu0 0
        %778 = vmatpush2.bf16.msra.mxu0 0
        %779 = vmatprep.subr.bf16.mxu0 0
        %780 = vmatpush2.bf16.msra.mxu0 0
        %781 = vmatprep.subr.bf16.mxu0 0
        %782 = vmatpush2.bf16.msra.mxu0 0
        %783 = vmatprep.subr.bf16.mxu0 0
        %784 = vmatpush2.bf16.msra.mxu0 0
        %785 = vmatprep.subr.bf16.mxu0 0
        %786 = vmatpush2.bf16.msra.mxu0 0
        %787 = vmatprep.subr.bf16.mxu0 0
        %788 = vmatpush2.bf16.msra.mxu0 0
        %789 = vmatprep.subr.bf16.mxu0 0
        %790 = vmatpush2.bf16.msra.mxu0 0
        %791 = vmatprep.subr.bf16.mxu0 0
        %792 = vmatpush2.bf16.msra.mxu0 0
        %793 = vmatprep.mubr.bf16.mxu0 0
        %794 = vmatmul.mubr.bf16.gmra.mxu0 %v759
        %v795 = vpop.f32.mrf.mxu0
        %v796 = vadd.f32 0.0, %v795
        %v797 = vpop.f32.mrf.mxu0
        %v798 = vpop.f32.mrf.mxu0
        %v799 = vadd.f32 0.0, %v798
        %v800 = vpop.f32.mrf.mxu0
        %801 = vdwg.mxu0
        %v802 = vxor.u32 %v796, 2147483648
        %v803 = vxor.u32 %v799, 2147483648
        %v804 = vmul.f32 %v802, 1.442695
        %v805 = vpow.pop %v804
        %v806 = vmul.f32 %v803, 1.442695
        %v807 = vpow.pop %v806
        %v808 = vadd.f32 %v805, 1.0
        %v809 = vadd.f32 %v807, 1.0
        %v810 = vrcp.pop %v808
        %v811 = vmul.f32 1.0, %v810
        %v812 = vrcp.pop %v809
        %v813 = vmul.f32 1.0, %v812
        %v814 = vtanh.pop %v796
        %v815 = vtanh.pop %v799
        %v816 = vld [vmem:[%s490] sm:$0xff]
        %v817 = vld [vmem:[%s490 + $0x8] sm:$0xff]
        %v818 = vld [vmem:[%s499] sm:$0xff]
        %v819 = vld [vmem:[%s499 + $0x8] sm:$0xff]
        %822 = vrot.lane.b32.xlu0 %v816, 16
        %v823 = vpop.permute.xlu0 %822
        %824 = vrot.lane.b32.xlu0 %v817, 16
        %v825 = vpop.permute.xlu0 %824
        %v828 = vmul.f32 %v811, %v823
        %v829 = vmul.f32 %v813, %v825
        %832 = vrot.lane.b32.xlu0 %v814, 80
        %v833 = vpop.permute.xlu0 %832
        %834 = vrot.lane.b32.xlu0 %v815, 80
        %v835 = vpop.permute.xlu0 %834
        %v838 = vmul.f32 %v811, %v833
        %v839 = vmul.f32 %v813, %v835
        %842 = vrot.lane.b32.xlu0 %v838, 16
        %v843 = vpop.permute.xlu0 %842
        %844 = vrot.lane.b32.xlu0 %v839, 16
        %v845 = vpop.permute.xlu0 %844
        %v848 = vadd.f32 %v828, %v843
        %v849 = vadd.f32 %v829, %v845
        %v850 = vtanh.pop %v818
        %v851 = vtanh.pop %v819
        %854 = vrot.lane.b32.xlu0 %v850, 32
        %v855 = vpop.permute.xlu0 %854
        %856 = vrot.lane.b32.xlu0 %v851, 32
        %v857 = vpop.permute.xlu0 %856
        %v860 = vmul.f32 %v811, %v855
        %v861 = vmul.f32 %v813, %v857
        %864 = vrot.lane.b32.xlu0 %v848, 112
        %v865 = vpop.permute.xlu0 %864
        %866 = vrot.lane.b32.xlu0 %v849, 112
        %v867 = vpop.permute.xlu0 %866
        %870 = vst.msk [vmem:[%s579] sm:$0xff] %vm757, %v865
        %871 = vst.msk [vmem:[%s579 + $0x8] sm:$0xff] %vm757, %v867
        %874 = vrot.lane.b32.xlu0 %v860, 96
        %v875 = vpop.permute.xlu0 %874
        %876 = vrot.lane.b32.xlu0 %v861, 96
        %v877 = vpop.permute.xlu0 %876
        %880 = vst.msk [vmem:[%s572] sm:$0xff] %vm757, %v875
        %881 = vst.msk [vmem:[%s572 + $0x8] sm:$0xff] %vm757, %v877
        %s882 = sadd.s32 %s33, 1
        %p883 = scmp.lt.s32.totalorder %s882, 2
        // Predicated region
        $region89: #{tpu_custom_call.1} parent=51 // pred_check
          %p884 = pneg %p883
        $region90: #{tpu_custom_call.1} parent=51 // pred_check_branch
          %886 = sbr.rel (%p884) target = $region92
        $region91: #{tpu_custom_call.1} parent=51 // pred_region
          %s887 = smul.u32 %s34, 16
          %v888 = vpack.c.bf16 %v861, %v860
          %v890 = vunpack.c.l.b16 %v888
          %v891 = vunpack.c.h.b16 %v888
          %v892 = vpack.c.b16 %v890, %v890
          %v893 = vpack.c.b16 %v891, %v891
          %894 = vrot.lane.b32.xlu0 %v892, 96
          %v895 = vpop.permute.xlu0 %894
          %896 = vrot.lane.b32.xlu0 %v893, 96
          %v897 = vpop.permute.xlu0 %896
          %s900 = sshra.s32 %s887, 3
          %s901 = sand.u32 %s887, 7
          %s902 = smul.addr %s900, 4
          %s903 = scalar_lea.vmem [#allocation2], %s902
          %vm904 = vcmask 125952
          %905 = vst.msk [vmem:[%s903] sm:$0xf] %vm904, %v895
          %906 = vst.msk [vmem:[%s903 + $0x4] sm:$0xf] %vm904, %v897
        $region92: #{tpu_custom_call.1} parent=51 // pred_fallthru
          _
        %s907 = sand.u32 %s258, 1
        %s908 = scalar_lea.sflag [#allocation6], %s907
        %s909 = sand.u32 %s258, 1
        %s910 = smul.addr %s909, 16
        %s911 = scalar_lea.vmem [#allocation14], %s910
        %s912 = sand.u32 %s286, 1
        %s913 = scalar_lea.sflag [#allocation16], %s912
        %s914 = sand.u32 %s286, 1
        %s915 = smul.addr %s914, 16
        %s916 = scalar_lea.vmem [#allocation15], %s915
        // Predicated region
        $region93: #{tpu_custom_call.1} parent=51 // pred_check
          %p917 = pneg %p268
        $region94: #{tpu_custom_call.1} parent=51 // pred_check_branch
          %919 = sbr.rel (%p917) target = $region96
        $region95: #{tpu_custom_call.1} parent=51 // pred_region
          %s920 = smul.u32 2, %s34
          %s922 = ssub.s32 256, 256
          %923 = vsyncadd %s908, %s922
          %s924 = smul.addr %s33, 2
          %s925 = sadd.s32 %s920, %s924
          %s926 = smul.addr %s925, 128
          %s927 = scalar_lea.hbm %s8, %s926
          %s928 = sshll.u32 %s911, 4
          %s929 = int_to_ptr.vmem [resolvable:$true] %s928
          %934 = dma.vmem_to_hbm [thread:$0]  %s929, 256, %s927, %s908, 128, 128, 8
        $region96: #{tpu_custom_call.1} parent=51 // pred_fallthru
          _
        // Predicated region
        $region97: #{tpu_custom_call.1} parent=51 // pred_check
          %p935 = pneg %p296
        $region98: #{tpu_custom_call.1} parent=51 // pred_check_branch
          %937 = sbr.rel (%p935) target = $region100
        $region99: #{tpu_custom_call.1} parent=51 // pred_region
          %s938 = smul.u32 2, %s34
          %s940 = ssub.s32 256, 256
          %941 = vsyncadd %s913, %s940
          %s942 = smul.addr %s33, 2
          %s943 = sadd.s32 %s938, %s942
          %s944 = smul.addr %s943, 128
          %s945 = scalar_lea.hbm %s9, %s944
          %s946 = sshll.u32 %s916, 4
          %s947 = int_to_ptr.vmem [resolvable:$true] %s946
          %952 = dma.vmem_to_hbm [thread:$0]  %s947, 256, %s945, %s913, 128, 128, 8
        $region100: #{tpu_custom_call.1} parent=51 // pred_fallthru
          _
      $region52: #{tpu_custom_call.1} parent=5 // pred_fallthru
        _
      %p953 = scmp.le.s32.totalorder 2, %s24
      // Predicated region
      $region101: #{tpu_custom_call.1} parent=5 // pred_check
        %p954 = pneg %p953
      $region102: #{tpu_custom_call.1} parent=5 // pred_check_branch
        %956 = sbr.rel (%p954) target = $region104
      $region103: #{tpu_custom_call.1} parent=5 // pred_region
        %s957 = ssub.s32 %s24, 2
        // Predicated region
        $region105: #{tpu_custom_call.1} parent=103 // pred_check
          %p958 = pneg %p274
        $region106: #{tpu_custom_call.1} parent=103 // pred_check_branch
          %960 = sbr.rel (%p958) target = $region108
        $region107: #{tpu_custom_call.1} parent=103 // pred_region
          %s961 = sand.u32 %s259, 1
          %s962 = scalar_lea.sflag [#allocation6], %s961
          %s963 = sand.u32 %s259, 1
          %s964 = smul.addr %s963, 16
          %s965 = scalar_lea.vmem [#allocation14], %s964
          %966 = dma.done %s962, 256
        $region108: #{tpu_custom_call.1} parent=103 // pred_fallthru
          _
        // Predicated region
        $region109: #{tpu_custom_call.1} parent=103 // pred_check
          %p967 = pneg %p302
        $region110: #{tpu_custom_call.1} parent=103 // pred_check_branch
          %969 = sbr.rel (%p967) target = $region112
        $region111: #{tpu_custom_call.1} parent=103 // pred_region
          %s970 = sand.u32 %s287, 1
          %s971 = scalar_lea.sflag [#allocation16], %s970
          %s972 = sand.u32 %s287, 1
          %s973 = smul.addr %s972, 16
          %s974 = scalar_lea.vmem [#allocation15], %s973
          %975 = dma.done %s971, 256
        $region112: #{tpu_custom_call.1} parent=103 // pred_fallthru
          _
      $region104: #{tpu_custom_call.1} parent=5 // pred_fallthru
        _
    $region6: #{tpu_custom_call.1} parent=1 // loop_footer
      %s28 = sadd.s32 1, %s24
    $region7: #{tpu_custom_call.1} parent=1 // loop_footer_branch
      %23 = sbr.rel target = $region3
    $region8: #{tpu_custom_call.1} parent=1 // loop_exit
      _
    %976 = vsyncpa [#allocation5], 1
    %s977 = scalar_lea.sflag [#allocation5], 1
    %978 = vsyncpa %s977, 1
    %979 = vsyncpa [#allocation8], 1
    %980 = vsyncpa [#allocation6], 1
    %s981 = scalar_lea.sflag [#allocation6], 1
    %982 = vsyncpa %s981, 1
    %983 = vsyncpa [#allocation16], 1
    %s984 = scalar_lea.sflag [#allocation16], 1
    %985 = vsyncpa %s984, 1

</llo_original>
